<compile_context>
chip_gen: v7x
topology: tpu7x:2x2x1
jax: 0.10.0
libtpu: 0.0.40
codegen_flags: <defaults>
</compile_context>

<pallas_src>
import numpy as np
import jax
import jax.numpy as jnp
from jax.experimental import pallas as pl
from jax.experimental.pallas import tpu as pltpu


_LANE = 128                       # lane multiple (last dim)
_ROW = 16                         # sublane multiple (second-last dim, bf16-friendly)
_TM, _TN, _TK = 256, 512, 512     # preferred tile sizes (clamped to padded dims)
_VMEM_LIMIT = 32 * 1024 * 1024    # explicit scoped VMEM; safe on v5e / v6e / v7x


# ---------------- small shape helpers ----------------

def _round_up(x, m):
    return ((x + m - 1) // m) * m


def _fit(dim, pref, mult):
    """Pick (tile, padded_dim): tile is a multiple of `mult` and divides padded_dim."""
    dp = _round_up(dim, mult)
    if dp <= pref:
        return dp, dp
    t = _round_up(pref, mult)
    return t, _round_up(dim, t)


def _pad2(a, rows, cols):
    r, c = a.shape
    if r == rows and c == cols:
        return a
    return jnp.pad(a, ((0, rows - r), (0, cols - c)))


# ---------------- Pallas kernels (hot path) ----------------

def _head_kernel(x_ref, w_ref, o_ref, acc_ref):
    # Tiled matmul: grid = (M, N, K); K is the innermost / "arbitrary" axis.
    @pl.when(pl.program_id(2) == 0)
    def _():
        acc_ref[...] = jnp.zeros_like(acc_ref)

    acc_ref[...] += jnp.dot(x_ref[...], w_ref[...],
                            preferred_element_type=jnp.float32)

    @pl.when(pl.program_id(2) == pl.num_programs(2) - 1)
    def _():
        o_ref[...] = acc_ref[...].astype(o_ref.dtype)


def _tail_kernel(x_ref, wproj_ref, wout_ref, o_ref, h_ref):
    # grid = (M tiles, V tiles).  The projection h = x_tile @ Wproj is computed
    # once per row tile (j == 0), stored in bf16 VMEM scratch, and reused for
    # every vocab tile j of that row tile (scratch persists across grid steps;
    # the V axis is "arbitrary" so this carry is sequential and legal).
    @pl.when(pl.program_id(1) == 0)
    def _():
        h_ref[...] = jnp.dot(x_ref[...], wproj_ref[...],
                             preferred_element_type=jnp.float32).astype(h_ref.dtype)

    o_ref[...] = jnp.dot(h_ref[...], wout_ref[...],
                         preferred_element_type=jnp.float32).astype(o_ref.dtype)


# ---------------- pallas_call wrappers ----------------

def head_matmul(x_b, w_p, *, tk, tn, out_rows, out_cols, out_dtype):
    """x_b:(N, Kp) bf16 lane-padded; w_p:(Kp, Np) bf16 pre-padded.
    Returns (out_rows, out_cols) in out_dtype."""
    N, Kp = x_b.shape
    Np = w_p.shape[1]
    tm, Mp = _fit(N, _TM, _ROW)
    x_p = _pad2(x_b, Mp, Kp)

    grid = (Mp // tm, Np // tn, Kp // tk)
    flops = 2 * Mp * Kp * Np
    bytes_accessed = Mp * Kp * 2 + Kp * Np * 2 + Mp * Np * np.dtype(out_dtype).itemsize

    out = pl.pallas_call(
        _head_kernel,
        out_shape=jax.ShapeDtypeStruct((Mp, Np), out_dtype),
        grid_spec=pltpu.PrefetchScalarGridSpec(
            num_scalar_prefetch=0,
            grid=grid,
            in_specs=[
                pl.BlockSpec((tm, tk), lambda i, j, k: (i, k)),
                pl.BlockSpec((tk, tn), lambda i, j, k: (k, j)),
            ],
            out_specs=pl.BlockSpec((tm, tn), lambda i, j, k: (i, j)),
            scratch_shapes=[pltpu.VMEM((tm, tn), jnp.float32)],
        ),
        compiler_params=pltpu.CompilerParams(
            dimension_semantics=("parallel", "parallel", "arbitrary"),
            vmem_limit_bytes=_VMEM_LIMIT,
        ),
        cost_estimate=pl.CostEstimate(
            flops=flops, transcendentals=0, bytes_accessed=bytes_accessed),
    )(x_p, w_p)
    return out[:out_rows, :out_cols]


def tail_matmul(xi_b, wproj_p, wout_p, *, tv, out_cols, out_dtype):
    """xi_b:(N_i, Kp) bf16 lane-padded; wproj_p:(Kp, dim_p) bf16; wout_p:(dim_p, Vp) bf16."""
    Ni, Kp = xi_b.shape
    dim_p = wproj_p.shape[1]
    Vp = wout_p.shape[1]
    tm, Mp = _fit(Ni, _TM, _ROW)
    x_p = _pad2(xi_b, Mp, Kp)

    grid = (Mp // tm, Vp // tv)
    flops = 2 * Mp * Kp * dim_p + 2 * Mp * dim_p * Vp
    bytes_accessed = (Mp * Kp * 2 + Kp * dim_p * 2 + dim_p * Vp * 2
                      + Mp * Vp * np.dtype(out_dtype).itemsize)

    out = pl.pallas_call(
        _tail_kernel,
        out_shape=jax.ShapeDtypeStruct((Mp, Vp), out_dtype),
        grid_spec=pltpu.PrefetchScalarGridSpec(
            num_scalar_prefetch=0,
            grid=grid,
            in_specs=[
                # full (padded) K resident per row tile: input_dim is modest for
                # adaptive softmax, so (tm, Kp) comfortably fits VMEM.
                pl.BlockSpec((tm, Kp), lambda i, j: (i, 0)),
                pl.BlockSpec((Kp, dim_p), lambda i, j: (0, 0)),
                pl.BlockSpec((dim_p, tv), lambda i, j: (0, j)),
            ],
            out_specs=pl.BlockSpec((tm, tv), lambda i, j: (i, j)),
            scratch_shapes=[pltpu.VMEM((tm, dim_p), jnp.bfloat16)],
        ),
        compiler_params=pltpu.CompilerParams(
            # V axis must stay sequential per row tile (h scratch reuse).
            dimension_semantics=("parallel", "arbitrary"),
            vmem_limit_bytes=_VMEM_LIMIT,
        ),
        cost_estimate=pl.CostEstimate(
            flops=flops, transcendentals=0, bytes_accessed=bytes_accessed),
    )(x_p, wproj_p, wout_p)
    return out[:Ni, :out_cols]


# ---------------- AdaptiveSoftmax module (glue in plain JAX / numpy) ----------------

class AdaptiveSoftmaxPallas:
    def __init__(self, vocab_size, input_dim, cutoff, dropout=0.0, factor=4.0,
                 key=jax.random.PRNGKey(0)):
        cutoff = list(cutoff)
        if vocab_size > cutoff[-1]:
            cutoff = cutoff + [vocab_size]
        else:
            assert vocab_size == cutoff[-1], "cannot specify cutoff larger than vocab size"
        self.vocab_size = vocab_size
        self.cutoff = [int(c) for c in cutoff]
        self.input_dim = int(input_dim)
        self.factor = factor
        # dropout is identity in eval / p=0
        output_dim = self.cutoff[0] + len(self.cutoff) - 1
        self.head_out_dim = output_dim

        n_tails = len(self.cutoff) - 1
        keys = jax.random.split(key, 1 + 2 * n_tails)

        def xavier(k, shape):  # torch xavier_uniform_ for a (fan_out, fan_in) weight
            fan_out, fan_in = shape
            limit = (6.0 / (fan_in + fan_out)) ** 0.5
            return jax.random.uniform(k, shape, jnp.float32, -limit, limit)

        # Shared K padding / tiling for all x @ W kernels (K = input_dim).
        self._tk, self._Kp = _fit(self.input_dim, _TK, _LANE)

        # Head: torch weight is (output_dim, input_dim); store transposed for x @ W,
        # keep an f32 copy for reference checks and a padded bf16 copy for the kernel.
        self.head_w = jnp.asarray(xavier(keys[0], (output_dim, self.input_dim)).T)  # (D, out)
        self._tn_head, self._Np_head = _fit(output_dim, _TN, _LANE)
        self.head_w_p = _pad2(self.head_w.astype(jnp.bfloat16), self._Kp, self._Np_head)

        # Tails: two-stage low-rank projections, padded/cast once at init.
        self.tail_raw = []     # (wproj f32 (D, dim), wout f32 (dim, V))
        self.tail = []         # dict with padded bf16 weights + tiling info
        for i in range(n_tails):
            dim = int(self.input_dim // factor ** (i + 1))
            V = self.cutoff[i + 1] - self.cutoff[i]
            wproj = jnp.asarray(xavier(keys[1 + 2 * i], (dim, self.input_dim)).T)        # (D, dim)
            wout = jnp.asarray(xavier(keys[2 + 2 * i], (V, dim)).T)                      # (dim, V)
            self.tail_raw.append((wproj, wout))

            dim_p = _round_up(dim, _LANE)
            tv, Vp = _fit(V, _TN, _LANE)
            self.tail.append(dict(
                wproj_p=_pad2(wproj.astype(jnp.bfloat16), self._Kp, dim_p),
                wout_p=_pad2(wout.astype(jnp.bfloat16), dim_p, Vp),
                tv=tv, V=V,
            ))

    def adapt_target(self, target):
        # Data-dependent output shapes (per-band row selection, None for empty
        # bands) force a host round trip here, matching PyTorch semantics.
        target = np.array(jax.device_get(target)).reshape(-1)
        new_target = [target.copy()]
        target_idxs = []
        for i in range(len(self.cutoff) - 1):
            mask = (target >= self.cutoff[i]) & (target < self.cutoff[i + 1])
            new_target[0][mask] = self.cutoff[0] + i
            if mask.any():
                target_idxs.append(np.nonzero(mask)[0])
                new_target.append(target[mask] - self.cutoff[i])
            else:
                target_idxs.append(None)
                new_target.append(None)
        return new_target, target_idxs

    def forward(self, inp, target):
        # inp: (B, T, D), target: (B, T) int
        x = jnp.reshape(inp, (-1, inp.shape[-1]))
        N = x.shape[0]
        out_dtype = x.dtype
        # dropout_module: identity (eval mode)
        new_target, target_idxs = self.adapt_target(target)

        # Cast to bf16 and lane-pad K exactly once; reused by head and all tails.
        x_b = _pad2(x.astype(jnp.bfloat16), N, self._Kp)

        output = [head_matmul(x_b, self.head_w_p, tk=self._tk, tn=self._tn_head,
                              out_rows=N, out_cols=self.head_out_dim,
                              out_dtype=out_dtype)]
        for i, idxs in enumerate(target_idxs):
            if idxs is not None:
                # TODO(synk): move this gather into the tail kernel via
                # PrefetchScalarGridSpec scalar-prefetch row indices (pl.Element
                # row blocks) to avoid the extra (N_i, Kp) HBM materialization.
                xi = jnp.take(x_b, jnp.asarray(idxs, dtype=jnp.int32), axis=0)
                t = self.tail[i]
                output.append(tail_matmul(xi, t["wproj_p"], t["wout_p"],
                                          tv=t["tv"], out_cols=t["V"],
                                          out_dtype=out_dtype))
            else:
                output.append(None)
        return output, new_target


# ---------------- demo / self-check ----------------

if __name__ == "__main__":
    B, T, D = 2, 8, 32
    cutoff = [8, 16]
    vocab_size = 24

    key = jax.random.PRNGKey(0)
    k_x, k_t, k_w = jax.random.split(key, 3)

    x = jax.random.normal(k_x, (B, T, D), dtype=jnp.float32)
    target = jax.random.randint(k_t, (B, T), 0, vocab_size, dtype=jnp.int32)

    model = AdaptiveSoftmaxPallas(vocab_size, D, cutoff, dropout=0.0, factor=2.0, key=k_w)

    output, new_target = model.forward(x, target)
    for o in output:
        if o is not None:
            jax.block_until_ready(o)

    # lightweight reference check (plain jnp, same bf16-in / f32-accumulate recipe)
    x2 = jnp.reshape(x, (-1, D))
    xb = x2.astype(jnp.bfloat16)
    ref_head = jnp.dot(xb, model.head_w.astype(jnp.bfloat16),
                       preferred_element_type=jnp.float32)
    assert np.allclose(np.asarray(output[0]), np.asarray(ref_head),
                       atol=2e-2, rtol=2e-2), "head mismatch"
    assert output[0].shape == (B * T, model.head_out_dim)

    _, target_idxs = model.adapt_target(target)
    for i, idxs in enumerate(target_idxs):
        if idxs is not None:
            wproj, wout = model.tail_raw[i]
            h = jnp.dot(xb[np.asarray(idxs)], wproj.astype(jnp.bfloat16),
                        preferred_element_type=jnp.float32).astype(jnp.bfloat16)
            ref_tail = jnp.dot(h, wout.astype(jnp.bfloat16),
                               preferred_element_type=jnp.float32)
            assert np.allclose(np.asarray(output[i + 1]), np.asarray(ref_tail),
                               atol=2e-2, rtol=2e-2), f"tail {i} mismatch"
            assert output[i + 1].shape == (len(idxs), model.cutoff[i + 1] - model.cutoff[i])
        else:
            assert output[i + 1] is None

    # new_target remapping check against the PyTorch semantics
    tgt = np.asarray(jax.device_get(target)).reshape(-1)
    remap = tgt.copy()
    for i in range(len(model.cutoff) - 1):
        m = (tgt >= model.cutoff[i]) & (tgt < model.cutoff[i + 1])
        remap[m] = model.cutoff[0] + i
    assert np.array_equal(new_target[0], remap)

    print("KERNEL_OK")
</pallas_src>

<mosaic_0001>
module attributes {stable_mosaic.version = 11 : i64} {
  func.func @_head_kernel(%arg0: i32, %arg1: i32, %arg2: i32, %arg3: memref<16x128xbf16, #tpu.memory_space<vmem>>, %arg4: memref<128x128xbf16, #tpu.memory_space<vmem>>, %arg5: memref<16x128xf32, #tpu.memory_space<vmem>>, %arg6: memref<16x128xf32, #tpu.memory_space<vmem>>) attributes {dimension_semantics = [#tpu.dimension_semantics<parallel>, #tpu.dimension_semantics<parallel>, #tpu.dimension_semantics<arbitrary>], iteration_bounds = array<i64: 1, 1, 1>, scalar_prefetch = 0 : i64, scratch_operands = 1 : i64, tpu.core_type = #tpu.core_type<tc>, window_params = [{transform_indices = @transform_0, window_bounds = array<i64: 16, 128>}, {transform_indices = @transform_1, window_bounds = array<i64: 128, 128>}, {transform_indices = @transform_2, window_bounds = array<i64: 16, 128>}]} {
    %c0_i32 = arith.constant 0 : i32
    %0 = arith.cmpi eq, %arg2, %c0_i32 : i32
    %1 = arith.extui %0 : i1 to i32
    %c0_i32_0 = arith.constant 0 : i32
    %2 = arith.cmpi ne, %1, %c0_i32_0 : i32
    scf.if %2 {
      %cst_10 = arith.constant 0.000000e+00 : f32
      %12 = vector.broadcast %cst_10 : f32 to vector<16x128xf32>
      %c0_11 = arith.constant 0 : index
      %c0_12 = arith.constant 0 : index
      %13 = vector.load %arg6[%c0_11, %c0_12] : memref<16x128xf32, #tpu.memory_space<vmem>>, vector<16x128xf32>
      tpu.vector_store %arg6[%c0_11, %c0_12], %12 {strides = array<i32>} : memref<16x128xf32, #tpu.memory_space<vmem>>, vector<16x128xf32>,
    } else {
    }
    %c0 = arith.constant 0 : index
    %c0_1 = arith.constant 0 : index
    %3 = vector.load %arg6[%c0, %c0_1] : memref<16x128xf32, #tpu.memory_space<vmem>>, vector<16x128xf32>
    %c0_2 = arith.constant 0 : index
    %c0_3 = arith.constant 0 : index
    %4 = vector.load %arg3[%c0_2, %c0_3] : memref<16x128xbf16, #tpu.memory_space<vmem>>, vector<16x128xbf16>
    %c0_4 = arith.constant 0 : index
    %c0_5 = arith.constant 0 : index
    %5 = vector.load %arg4[%c0_4, %c0_5] : memref<128x128xbf16, #tpu.memory_space<vmem>>, vector<128x128xbf16>
    %cst = arith.constant dense<0.000000e+00> : vector<16x128xf32>
    %6 = tpu.matmul %4, %5, %cst {dimension_numbers = #tpu.dot_dimension_numbers<[1], [0], [0], [1], [0, 0, 1, 1], [], []>} : vector<16x128xbf16>, vector<128x128xbf16>, vector<16x128xf32> -> vector<16x128xf32>
    %7 = arith.addf %3, %6 : vector<16x128xf32>
    %c0_6 = arith.constant 0 : index
    %c0_7 = arith.constant 0 : index
    %8 = vector.load %arg6[%c0_6, %c0_7] : memref<16x128xf32, #tpu.memory_space<vmem>>, vector<16x128xf32>
    tpu.vector_store %arg6[%c0_6, %c0_7], %7 {strides = array<i32>} : memref<16x128xf32, #tpu.memory_space<vmem>>, vector<16x128xf32>,
    %c0_i32_8 = arith.constant 0 : i32
    %9 = arith.cmpi eq, %arg2, %c0_i32_8 : i32
    %10 = arith.extui %9 : i1 to i32
    %c0_i32_9 = arith.constant 0 : i32
    %11 = arith.cmpi ne, %10, %c0_i32_9 : i32
    scf.if %11 {
      %c0_10 = arith.constant 0 : index
      %c0_11 = arith.constant 0 : index
      %12 = vector.load %arg6[%c0_10, %c0_11] : memref<16x128xf32, #tpu.memory_space<vmem>>, vector<16x128xf32>
      %c0_12 = arith.constant 0 : index
      %c0_13 = arith.constant 0 : index
      %13 = vector.load %arg5[%c0_12, %c0_13] : memref<16x128xf32, #tpu.memory_space<vmem>>, vector<16x128xf32>
      tpu.vector_store %arg5[%c0_12, %c0_13], %12 {strides = array<i32>} : memref<16x128xf32, #tpu.memory_space<vmem>>, vector<16x128xf32>,
    } else {
    }
    return
  }
  func.func @transform_0(%arg0: i32, %arg1: i32, %arg2: i32) -> (i32, i32) {
    %c0_i32 = arith.constant 0 : i32
    return %arg0, %arg2 : i32, i32
  }
  func.func @transform_1(%arg0: i32, %arg1: i32, %arg2: i32) -> (i32, i32) {
    %c0_i32 = arith.constant 0 : i32
    return %arg2, %arg1 : i32, i32
  }
  func.func @transform_2(%arg0: i32, %arg1: i32, %arg2: i32) -> (i32, i32) {
    %c0_i32 = arith.constant 0 : i32
    return %arg0, %arg1 : i32, i32
  }
}

</mosaic_0001>

<llo_original>
// kernel: tpu_custom_call.1
$region0: #{tpu_custom_call.1}
  #allocation0 [shape = 'u32[]', space=smem, size = 0x4, offset = 0x4, fixed_abs, tag = 'smem constant byte address 0x4 - core index']
  #allocation1 [shape = 'u32[144,128]{1,0:T(1,128)}', space=vmem, size = 0x12000, scoped, tag = 'internal scratch']
  #allocation2 [shape = 'f32[16,128]{1,0:T(8,128)}', space=vmem, size = 0x2000, scoped, tag = 'scratch operand']
  %s0 = inlined_call_operand.hbm [shape: bf16[16,128], index: 0, kind: input, shape index: {}]
  %s1 = inlined_call_operand.hbm [shape: bf16[128,128], index: 1, kind: input, shape index: {}]
  %s2 = inlined_call_operand.hbm [shape: f32[16,128], index: 2, kind: output, shape index: {}]
  %s3 = sld [smem:[#allocation0]]
  $region34: #{tpu_custom_call.1} parent=0
    _
  %s5 = ssub.s32 1, %s3
  %s6 = scalar_select 0, %s5, %s3
  $region1: #{tpu_custom_call.1} parent=0
    #allocation3 [shape = 'u8[4096]{0}', space=vmem, size = 0x1000, scoped, tag = 'input window, operand 0, single buffered']
    #allocation4 [shape = 's32[1]{0}', space=sflag, size = 0x4, scoped, tag = 'scoped memory for tpu_custom_call.1']
    #allocation5 [shape = 's32[1]{0}', space=sflag, size = 0x4, scoped, tag = 'scoped memory for tpu_custom_call.1']
    #allocation6 [shape = 'u8[32768]{0}', space=vmem, size = 0x8000, scoped, tag = 'input window, operand 1, single buffered']
    #allocation7 [shape = 's32[1]{0}', space=sflag, size = 0x4, scoped, tag = 'scoped memory for tpu_custom_call.1']
    #allocation8 [shape = 'u8[8192]{0}', space=vmem, size = 0x2000, scoped, tag = 'output window, operand 0, single buffered']
    %7 = vsyncpa [#allocation4], 0
    %8 = vsyncpa [#allocation7], 0
    %9 = vsyncpa [#allocation5], 0
    // Predicated region
    $region2: #{tpu_custom_call.1} parent=1 // pred_check
      _
    $region3: #{tpu_custom_call.1} parent=1 // pred_check_branch
      %11 = sbr.rel (0) target = $region5
    $region4: #{tpu_custom_call.1} parent=1 // pred_region
      %s13 = ssub.s32 128, 128
      %14 = vsyncadd [#allocation4], %s13
      %s15 = sshll.u32 [#allocation3], 4
      %s16 = int_to_ptr.vmem [resolvable:$true] %s15
      %21 = dma.hbm_to_vmem [thread:$0]  %s0, 128, %s16, [#allocation4], 64, 64, 4
    $region5: #{tpu_custom_call.1} parent=1 // pred_fallthru
      _
    // Predicated region
    $region6: #{tpu_custom_call.1} parent=1 // pred_check
      _
    $region7: #{tpu_custom_call.1} parent=1 // pred_check_branch
      %23 = sbr.rel (0) target = $region9
    $region8: #{tpu_custom_call.1} parent=1 // pred_region
      %s25 = ssub.s32 1024, 1024
      %26 = vsyncadd [#allocation7], %s25
      %s27 = sshll.u32 [#allocation6], 4
      %s28 = int_to_ptr.vmem [resolvable:$true] %s27
      %33 = dma.hbm_to_vmem [thread:$0]  %s1, 1024, %s28, [#allocation7], 64, 64, 4
    $region9: #{tpu_custom_call.1} parent=1 // pred_fallthru
      _
    // Predicated region
    $region10: #{tpu_custom_call.1} parent=1 // pred_check
      _
    $region11: #{tpu_custom_call.1} parent=1 // pred_check_branch
      %35 = sbr.rel (0) target = $region13
    $region12: #{tpu_custom_call.1} parent=1 // pred_region
      %36 = dma.done [#allocation4], 128
    $region13: #{tpu_custom_call.1} parent=1 // pred_fallthru
      _
    // Predicated region
    $region14: #{tpu_custom_call.1} parent=1 // pred_check
      _
    $region15: #{tpu_custom_call.1} parent=1 // pred_check_branch
      %38 = sbr.rel (0) target = $region17
    $region16: #{tpu_custom_call.1} parent=1 // pred_region
      %39 = dma.done [#allocation7], 1024
    $region17: #{tpu_custom_call.1} parent=1 // pred_fallthru
      _
    %p41 = scmp.eq.s32.totalorder 0, 0
    // Predicated region
    $region18: #{tpu_custom_call.1} parent=1 // pred_check
      %p42 = pneg %p41
    $region19: #{tpu_custom_call.1} parent=1 // pred_check_branch
      %44 = sbr.rel (%p42) target = $region21
    $region20: #{tpu_custom_call.1} parent=1 // pred_region
      %45 = vst [vmem:[#allocation2] sm:$0xff] 0.0
      %46 = vst [vmem:[#allocation2 + $0x8] sm:$0xff] 0.0
    $region21: #{tpu_custom_call.1} parent=1 // pred_fallthru
      _
    %v47 = vld [vmem:[#allocation2] sm:$0xff]
    %v48 = vld [vmem:[#allocation2 + $0x8] sm:$0xff]
    %v49 = vld [vmem:[#allocation3] sm:$0xf]
    %v50 = vld [vmem:[#allocation3 + $0x4] sm:$0xf]
    %v51 = vld [vmem:[#allocation6] sm:$0xf]
    %v52 = vld [vmem:[#allocation6 + $0x4] sm:$0xf]
    %v53 = vld [vmem:[#allocation6 + $0x8] sm:$0xf]
    %v54 = vld [vmem:[#allocation6 + $0xc] sm:$0xf]
    %v55 = vld [vmem:[#allocation6 + $0x10] sm:$0xf]
    %v56 = vld [vmem:[#allocation6 + $0x14] sm:$0xf]
    %v57 = vld [vmem:[#allocation6 + $0x18] sm:$0xf]
    %v58 = vld [vmem:[#allocation6 + $0x1c] sm:$0xf]
    %v59 = vld [vmem:[#allocation6 + $0x20] sm:$0xf]
    %v60 = vld [vmem:[#allocation6 + $0x24] sm:$0xf]
    %v61 = vld [vmem:[#allocation6 + $0x28] sm:$0xf]
    %v62 = vld [vmem:[#allocation6 + $0x2c] sm:$0xf]
    %v63 = vld [vmem:[#allocation6 + $0x30] sm:$0xf]
    %v64 = vld [vmem:[#allocation6 + $0x34] sm:$0xf]
    %v65 = vld [vmem:[#allocation6 + $0x38] sm:$0xf]
    %v66 = vld [vmem:[#allocation6 + $0x3c] sm:$0xf]
    %v69 = vunpack.c.l.b16 %v49
    %v70 = vunpack.c.l.b16 %v50
    %v71 = vpack.c.b16 %v70, %v69
    %v89 = vunpack.c.l.b16 %v51
    %v90 = vunpack.c.l.b16 %v52
    %v91 = vunpack.c.l.b16 %v53
    %v92 = vunpack.c.l.b16 %v54
    %v93 = vunpack.c.l.b16 %v55
    %v94 = vunpack.c.l.b16 %v56
    %v95 = vunpack.c.l.b16 %v57
    %v96 = vunpack.c.l.b16 %v58
    %v97 = vunpack.c.l.b16 %v59
    %v98 = vunpack.c.l.b16 %v60
    %v99 = vunpack.c.l.b16 %v61
    %v100 = vunpack.c.l.b16 %v62
    %v101 = vunpack.c.l.b16 %v63
    %v102 = vunpack.c.l.b16 %v64
    %v103 = vunpack.c.l.b16 %v65
    %v104 = vunpack.c.l.b16 %v66
    %v105 = vpack.c.b16 %v90, %v89
    %v106 = vpack.c.b16 %v92, %v91
    %v107 = vpack.c.b16 %v94, %v93
    %v108 = vpack.c.b16 %v96, %v95
    %v109 = vpack.c.b16 %v98, %v97
    %v110 = vpack.c.b16 %v100, %v99
    %v111 = vpack.c.b16 %v102, %v101
    %v112 = vpack.c.b16 %v104, %v103
    %121 = vmatprep.subr.bf16.mxu0 0
    %122 = vmatpush1.bf16.msra.mxu0 %v105
    %123 = vmatprep.subr.bf16.mxu0 0
    %124 = vmatpush1.bf16.msra.mxu0 %v106
    %125 = vmatprep.subr.bf16.mxu0 0
    %126 = vmatpush1.bf16.msra.mxu0 %v107
    %127 = vmatprep.subr.bf16.mxu0 0
    %128 = vmatpush1.bf16.msra.mxu0 %v108
    %129 = vmatprep.subr.bf16.mxu0 0
    %130 = vmatpush1.bf16.msra.mxu0 %v109
    %131 = vmatprep.subr.bf16.mxu0 0
    %132 = vmatpush1.bf16.msra.mxu0 %v110
    %133 = vmatprep.subr.bf16.mxu0 0
    %134 = vmatpush1.bf16.msra.mxu0 %v111
    %135 = vmatprep.subr.bf16.mxu0 0
    %136 = vmatpush1.bf16.msra.mxu0 %v112
    %137 = vmatprep.subr.bf16.mxu0 0
    %138 = vmatpush1.bf16.msra.mxu0 0
    %139 = vmatprep.subr.bf16.mxu0 0
    %140 = vmatpush1.bf16.msra.mxu0 0
    %141 = vmatprep.subr.bf16.mxu0 0
    %142 = vmatpush1.bf16.msra.mxu0 0
    %143 = vmatprep.subr.bf16.mxu0 0
    %144 = vmatpush1.bf16.msra.mxu0 0
    %145 = vmatprep.subr.bf16.mxu0 0
    %146 = vmatpush1.bf16.msra.mxu0 0
    %147 = vmatprep.subr.bf16.mxu0 0
    %148 = vmatpush1.bf16.msra.mxu0 0
    %149 = vmatprep.subr.bf16.mxu0 0
    %150 = vmatpush1.bf16.msra.mxu0 0
    %151 = vmatprep.subr.bf16.mxu0 0
    %152 = vmatpush1.bf16.msra.mxu0 0
    %153 = vmatprep.mubr.bf16.mxu0 0
    %154 = vmatmul.mubr.bf16.gmra.mrb[0].mxu0 %v71
    %v155 = vpop.f32.mrb[0].mxu0
    %v156 = vadd.f32 0.0, %v155
    %v157 = vpop.f32.mrb[0].mxu0
    %v158 = vpop.f32.mrb[0].mxu0
    %v159 = vadd.f32 0.0, %v158
    %v160 = vpop.f32.mrb[0].mxu0
    %161 = vdwg.mxu0
    %v162 = vadd.f32 %v47, %v156
    %v163 = vadd.f32 %v48, %v159
    %164 = vst [vmem:[#allocation2] sm:$0xff] %v162
    %165 = vst [vmem:[#allocation2 + $0x8] sm:$0xff] %v163
    // Predicated region
    $region22: #{tpu_custom_call.1} parent=1 // pred_check
      %p166 = pneg %p41
    $region23: #{tpu_custom_call.1} parent=1 // pred_check_branch
      %168 = sbr.rel (%p166) target = $region25
    $region24: #{tpu_custom_call.1} parent=1 // pred_region
      %v169 = vld [vmem:[#allocation2] sm:$0xff]
      %v170 = vld [vmem:[#allocation2 + $0x8] sm:$0xff]
      %171 = vst [vmem:[#allocation8] sm:$0xff] %v169
      %172 = vst [vmem:[#allocation8 + $0x8] sm:$0xff] %v170
    $region25: #{tpu_custom_call.1} parent=1 // pred_fallthru
      _
    // Predicated region
    $region26: #{tpu_custom_call.1} parent=1 // pred_check
      _
    $region27: #{tpu_custom_call.1} parent=1 // pred_check_branch
      %174 = sbr.rel (0) target = $region29
    $region28: #{tpu_custom_call.1} parent=1 // pred_region
      %s176 = ssub.s32 256, 256
      %177 = vsyncadd [#allocation5], %s176
      %s178 = sshll.u32 [#allocation8], 4
      %s179 = int_to_ptr.vmem [resolvable:$true] %s178
      %184 = dma.vmem_to_hbm [thread:$0]  %s179, 256, %s2, [#allocation5], 128, 128, 8
    $region29: #{tpu_custom_call.1} parent=1 // pred_fallthru
      _
    // Predicated region
    $region30: #{tpu_custom_call.1} parent=1 // pred_check
      _
    $region31: #{tpu_custom_call.1} parent=1 // pred_check_branch
      %186 = sbr.rel (0) target = $region33
    $region32: #{tpu_custom_call.1} parent=1 // pred_region
      %187 = dma.done [#allocation5], 256
    $region33: #{tpu_custom_call.1} parent=1 // pred_fallthru
      _
    %188 = vsyncpa [#allocation4], 1
    %189 = vsyncpa [#allocation7], 1
    %190 = vsyncpa [#allocation5], 1

</llo_original>
